<compile_context>
chip_gen: v7x
topology: tpu7x:2x2x1
jax: 0.10.0
libtpu: 0.0.40
codegen_flags: <defaults>
</compile_context>

<pallas_src>
import functools

import jax
import jax.numpy as jnp
from jax.experimental import pallas as pl
from jax.experimental.pallas import tpu as pltpu


def _round_up(x, m):
    return ((x + m - 1) // m) * m


def _vmem_capacity_bytes():
    """Physical VMEM per TensorCore; conservative 64 MiB (v7x) if unqueryable."""
    try:
        return int(pltpu.get_tpu_info().vmem_capacity_bytes)
    except Exception:
        return 64 << 20


def _has_bf16_eup():
    """bf16 transcendentals exist on v6e/v7x; v5e and older have f32-only EUP."""
    try:
        kind = jax.devices()[0].device_kind.lower()
    except Exception:
        return False
    return not any(tag in kind for tag in ("v2", "v3", "v4", "v5"))


def _choose_block_n(n, c, itemsize, vmem_cap):
    """Row-tile size: as big as the VMEM budget allows, accounting for the
    double-buffered native-dtype input tile plus in-kernel f32 temporaries,
    while keeping >= ~4 grid steps (v7x has 2 TCs sharing the parallel axis)."""
    # 2*itemsize : double-buffered logits tile (input pipeline)
    # ~12        : f32 working copy + ~2 full-tile f32 intermediates in-kernel
    bytes_per_row = c * (2 * itemsize + 12) + 64     # +64: tgt/weight/out columns
    budget = int(vmem_cap * 0.4)                     # headroom for compiler scratch
    align = 8 if itemsize >= 4 else (16 if itemsize == 2 else 32)
    bn = max(align, (budget // bytes_per_row) // align * align)
    bn = min(bn, _round_up(pl.cdiv(n, 4), align))    # keep several blocks for 2 TCs
    bn = min(bn, _round_up(n, 8))                    # never exceed the batch
    return max(8, (bn // 8) * 8)


def _focal_loss_kernel(logits_ref, targets_ref, weight_ref, out_ref, *,
                       gamma, n_rows, block_n, mask_tail, bf16_exp):
    """Per-row focal loss for one (BLOCK_N, C) tile.

    logits_ref:  (BLOCK_N, C) native dtype
    targets_ref: (BLOCK_N, 1) int32
    weight_ref:  (BLOCK_N, 1) f32  -- alpha_t per row (1.0 if no alpha)
    out_ref:     (BLOCK_N, 1) f32  -- weight * (1 - p_t)^gamma * ce
    """
    logits = logits_ref[...].astype(jnp.float32)          # (BN, C)
    tgt = targets_ref[...]                                 # (BN, 1) int32
    w = weight_ref[...]                                    # (BN, 1) f32
    bn, c = logits.shape

    valid = None
    if mask_tail:
        # Ragged last block: rows >= n_rows hold unspecified VMEM.  Zero them so
        # exp/log never see garbage; their outputs are dropped by Pallas anyway.
        row = pl.program_id(0) * block_n + jax.lax.broadcasted_iota(
            jnp.int32, (bn, 1), 0)
        valid = row < n_rows                               # (BN, 1) bool
        logits = jnp.where(valid, logits, 0.0)

    # target logit via iota-compare (no materialized one-hot, no lane gather)
    cls_idx = jax.lax.broadcasted_iota(jnp.int32, (bn, c), 1)
    tgt_logit = jnp.sum(jnp.where(cls_idx == tgt, logits, 0.0),
                        axis=-1, keepdims=True)            # (BN, 1)

    # numerically stable cross entropy: ce = logsumexp(logits) - logits[target]
    m = jnp.max(logits, axis=-1, keepdims=True)
    shifted = logits - m                                    # <= 0 everywhere
    if bf16_exp:
        # bf16 EUP path (v6e/v7x): ~2x transcendental throughput; args <= 0 so the
        # bf16 rounding error is bounded.  Sum / downstream math stay in f32.
        e = jnp.exp(shifted.astype(jnp.bfloat16)).astype(jnp.float32)
    else:
        e = jnp.exp(shifted)
    lse = m + jnp.log(jnp.sum(e, axis=-1, keepdims=True))
    ce = lse - tgt_logit                                    # (BN, 1)

    # focal modulation: (1 - p_t)^gamma * ce, clamped so non-integer gamma never
    # sees a negative base from 1 ULP of p_t > 1 noise.
    p_t = jnp.exp(-ce)
    one_minus = jnp.maximum(1.0 - p_t, 0.0)
    g = float(gamma)
    if g == 2.0:
        mod = one_minus * one_minus
    elif g == 1.0:
        mod = one_minus
    elif g == 0.0:
        mod = jnp.ones_like(one_minus)
    else:
        mod = jnp.power(one_minus, jnp.float32(g))

    result = w * mod * ce
    if mask_tail:
        result = jnp.where(valid, result, 0.0)
    out_ref[...] = result


def focal_loss(logits, targets, alpha=None, gamma=2.0, reduction="mean"):
    """JAX/Pallas equivalent of FocalLoss.forward(inputs, targets).

    logits:  (N, C) float (any float dtype; streamed in native dtype)
    targets: (N,)   int
    alpha:   None | float | per-class sequence of length C
    reduction: 'none' | 'mean' | 'sum'

    NOTE: out-of-range target indices are not checked (they yield ce = logsumexp),
    unlike PyTorch which raises; per-class alpha length is not validated vs C.
    """
    n, c = logits.shape
    itemsize = jnp.dtype(logits.dtype).itemsize
    vmem_cap = _vmem_capacity_bytes()

    block_n = _choose_block_n(n, c, itemsize, vmem_cap)
    num_blocks = pl.cdiv(n, block_n)
    mask_tail = (n % block_n) != 0

    targets = targets.astype(jnp.int32).reshape(n, 1)

    # per-row weight: alpha_t gathered in XLA (cheap (N,)-sized gather)
    if alpha is None:
        weight = jnp.ones((n, 1), dtype=jnp.float32)
    elif isinstance(alpha, (float, int)):
        weight = jnp.full((n, 1), float(alpha), dtype=jnp.float32)
    else:
        weight = jnp.asarray(alpha, dtype=jnp.float32)[targets[:, 0]].reshape(n, 1)

    # VMEM budgeting (generation-aware cap: never request more than capacity - 8 MiB,
    # which keeps the raise path valid on v7x's 64 MiB per-TC VMEM).
    in_tile = block_n * c * itemsize
    f32_temps = 3 * block_n * c * 4
    small_bufs = 8 * block_n * 4
    working_set = 2 * in_tile + f32_temps + small_bufs
    vmem_limit = int(min(max(vmem_cap - (8 << 20), 16 << 20),
                         max(2 * working_set + (2 << 20), 16 << 20)))

    compiler_params = pltpu.CompilerParams(
        dimension_semantics=("parallel",),
        vmem_limit_bytes=vmem_limit,
    )

    cost = pl.CostEstimate(
        flops=8 * n * c,
        transcendentals=n * c + 3 * n,
        bytes_accessed=n * c * itemsize + n * (4 + 4 + 4),
    )

    bf16_exp = (logits.dtype == jnp.bfloat16) and _has_bf16_eup()

    kernel = functools.partial(
        _focal_loss_kernel,
        gamma=gamma, n_rows=n, block_n=block_n,
        mask_tail=mask_tail, bf16_exp=bf16_exp,
    )

    per_row = pl.pallas_call(
        kernel,
        out_shape=jax.ShapeDtypeStruct((n, 1), jnp.float32),
        grid=(num_blocks,),
        in_specs=[
            pl.BlockSpec((block_n, c), lambda i: (i, 0)),   # logits tile (native dtype)
            pl.BlockSpec((block_n, 1), lambda i: (i, 0)),   # targets tile
            pl.BlockSpec((block_n, 1), lambda i: (i, 0)),   # alpha_t tile
        ],
        out_specs=pl.BlockSpec((block_n, 1), lambda i: (i, 0)),
        compiler_params=compiler_params,
        cost_estimate=cost,
    )(logits, targets, weight)

    vals = per_row[:, 0]
    if reduction == "mean":
        return jnp.sum(vals) / jnp.float32(n)
    if reduction == "sum":
        return jnp.sum(vals)
    return vals                                             # 'none'


def _reference(logits, targets, alpha, gamma, reduction):
    """Pure-JAX reference mirroring the PyTorch module (all-f32 math)."""
    logits = logits.astype(jnp.float32)
    logp = jax.nn.log_softmax(logits, axis=-1)
    ce = -jnp.take_along_axis(logp, targets[:, None].astype(jnp.int32), axis=-1)[:, 0]
    p_t = jnp.exp(-ce)
    fl = (1.0 - p_t) ** gamma * ce
    if alpha is not None:
        if isinstance(alpha, (float, int)):
            fl = alpha * fl
        else:
            fl = jnp.asarray(alpha, jnp.float32)[targets] * fl
    if reduction == "mean":
        return fl.mean()
    if reduction == "sum":
        return fl.sum()
    return fl


if __name__ == "__main__":
    key = jax.random.PRNGKey(0)
    k1, k2, k3, k4 = jax.random.split(key, 4)

    # Case 1: N=8, C=32, per-class alpha list, mean reduction (f32 logits).
    N, C = 8, 32
    logits = jax.random.normal(k1, (N, C), dtype=jnp.float32)
    targets = jax.random.randint(k2, (N,), 0, C, dtype=jnp.int32)
    alpha_list = [0.25 + 0.5 * i / (C - 1) for i in range(C)]

    out = jax.block_until_ready(focal_loss(logits, targets, alpha=alpha_list,
                                           gamma=2.0, reduction="mean"))
    ref = _reference(logits, targets, alpha_list, 2.0, "mean")
    assert jnp.allclose(out, ref, rtol=1e-5, atol=1e-5), (out, ref)

    # Case 2: same inputs, sum reduction, no alpha.
    out = jax.block_until_ready(focal_loss(logits, targets, alpha=None,
                                           gamma=2.0, reduction="sum"))
    ref = _reference(logits, targets, None, 2.0, "sum")
    assert jnp.allclose(out, ref, rtol=1e-5, atol=1e-5), (out, ref)

    # Case 3: non-multiple-of-block batch, scalar alpha, 'none' reduction
    # (exercises the ragged last block + in-kernel tail mask, no padding copy).
    N2, C2 = 13, 40
    logits2 = jax.random.normal(k3, (N2, C2), dtype=jnp.float32)
    targets2 = jax.random.randint(k4, (N2,), 0, C2, dtype=jnp.int32)
    out = jax.block_until_ready(focal_loss(logits2, targets2, alpha=0.5,
                                           gamma=2.0, reduction="none"))
    ref = _reference(logits2, targets2, 0.5, 2.0, "none")
    assert out.shape == (N2,)
    assert jnp.allclose(out, ref, rtol=1e-5, atol=1e-5), (out, ref)
    assert bool(jnp.all(jnp.isfinite(out)))

    # Case 4: native bf16 logits streamed straight through the DMA (bf16 exp path
    # on v6e/v7x) -- compared against the all-f32 reference with a bf16 tolerance.
    logits_bf16 = logits.astype(jnp.bfloat16)
    out = jax.block_until_ready(focal_loss(logits_bf16, targets, alpha=alpha_list,
                                           gamma=2.0, reduction="mean"))
    ref = _reference(logits_bf16, targets, alpha_list, 2.0, "mean")
    assert jnp.allclose(out, ref, rtol=2e-2, atol=2e-2), (out, ref)

    print("KERNEL_OK")
</pallas_src>

<mosaic_0001>
module attributes {stable_mosaic.version = 11 : i64} {
  func.func @_focal_loss_kernel(%arg0: i32, %arg1: memref<8x32xf32, #tpu.memory_space<vmem>>, %arg2: memref<8x1xi32, #tpu.memory_space<vmem>>, %arg3: memref<8x1xf32, #tpu.memory_space<vmem>>, %arg4: memref<8x1xf32, #tpu.memory_space<vmem>>) attributes {dimension_semantics = [#tpu.dimension_semantics<parallel>], iteration_bounds = array<i64: 1>, scalar_prefetch = 0 : i64, scratch_operands = 0 : i64, tpu.core_type = #tpu.core_type<tc>, window_params = [{transform_indices = @transform_0, window_bounds = array<i64: 8, 32>}, {transform_indices = @transform_1, window_bounds = array<i64: 8, 1>}, {transform_indices = @transform_2, window_bounds = array<i64: 8, 1>}, {transform_indices = @transform_3, window_bounds = array<i64: 8, 1>}]} {
    %c0 = arith.constant 0 : index
    %c0_0 = arith.constant 0 : index
    %0 = vector.load %arg1[%c0, %c0_0] : memref<8x32xf32, #tpu.memory_space<vmem>>, vector<8x32xf32>
    %c0_1 = arith.constant 0 : index
    %c0_2 = arith.constant 0 : index
    %1 = vector.load %arg2[%c0_1, %c0_2] : memref<8x1xi32, #tpu.memory_space<vmem>>, vector<8x1xi32>
    %c0_3 = arith.constant 0 : index
    %c0_4 = arith.constant 0 : index
    %2 = vector.load %arg3[%c0_3, %c0_4] : memref<8x1xf32, #tpu.memory_space<vmem>>, vector<8x1xf32>
    %3 = tpu.iota {dimensions = array<i32: 1>} : vector<8x32xi32>
    %4 = vector.broadcast %1 : vector<8x1xi32> to vector<8x32xi32>
    %5 = arith.cmpi eq, %3, %4 : vector<8x32xi32>
    %cst = arith.constant 0.000000e+00 : f32
    %6 = vector.broadcast %cst : f32 to vector<8x32xf32>
    %7 = arith.select %5, %0, %6 : vector<8x32xi1>, vector<8x32xf32>
    %cst_5 = arith.constant dense<0.000000e+00> : vector<8xf32>
    %8 = vector.multi_reduction <add>, %7, %cst_5 [1] : vector<8x32xf32> to vector<8xf32>
    %9 = vector.shape_cast %8 : vector<8xf32> to vector<8x1xf32>
    %cst_6 = arith.constant dense<0xFF800000> : vector<8xf32>
    %10 = vector.multi_reduction <maximumf>, %0, %cst_6 [1] : vector<8x32xf32> to vector<8xf32>
    %11 = vector.shape_cast %10 : vector<8xf32> to vector<8x1xf32>
    %12 = vector.broadcast %11 : vector<8x1xf32> to vector<8x32xf32>
    %13 = arith.subf %0, %12 : vector<8x32xf32>
    %14 = math.exp %13 : vector<8x32xf32>
    %cst_7 = arith.constant dense<0.000000e+00> : vector<8xf32>
    %15 = vector.multi_reduction <add>, %14, %cst_7 [1] : vector<8x32xf32> to vector<8xf32>
    %16 = vector.shape_cast %15 : vector<8xf32> to vector<8x1xf32>
    %17 = math.log %16 : vector<8x1xf32>
    %18 = arith.addf %11, %17 : vector<8x1xf32>
    %19 = arith.subf %18, %9 : vector<8x1xf32>
    %cst_8 = arith.constant 0.000000e+00 : f32
    %20 = vector.broadcast %cst_8 : f32 to vector<8x1xf32>
    %21 = arith.subf %20, %19 : vector<8x1xf32>
    %22 = math.exp %21 : vector<8x1xf32>
    %cst_9 = arith.constant 1.000000e+00 : f32
    %23 = vector.broadcast %cst_9 : f32 to vector<8x1xf32>
    %24 = arith.subf %23, %22 : vector<8x1xf32>
    %cst_10 = arith.constant 0.000000e+00 : f32
    %25 = vector.broadcast %cst_10 : f32 to vector<8x1xf32>
    %26 = arith.maximumf %24, %25 : vector<8x1xf32>
    %27 = arith.mulf %26, %26 : vector<8x1xf32>
    %28 = arith.mulf %2, %27 : vector<8x1xf32>
    %29 = arith.mulf %28, %19 : vector<8x1xf32>
    %c0_11 = arith.constant 0 : index
    %c0_12 = arith.constant 0 : index
    %30 = vector.load %arg4[%c0_11, %c0_12] : memref<8x1xf32, #tpu.memory_space<vmem>>, vector<8x1xf32>
    tpu.vector_store %arg4[%c0_11, %c0_12], %29 {strides = array<i32>} : memref<8x1xf32, #tpu.memory_space<vmem>>, vector<8x1xf32>,
    return
  }
  func.func @transform_0(%arg0: i32) -> (i32, i32) {
    %c0_i32 = arith.constant 0 : i32
    %c0_i32_0 = arith.constant 0 : i32
    return %arg0, %c0_i32 : i32, i32
  }
  func.func @transform_1(%arg0: i32) -> (i32, i32) {
    %c0_i32 = arith.constant 0 : i32
    %c0_i32_0 = arith.constant 0 : i32
    return %arg0, %c0_i32 : i32, i32
  }
  func.func @transform_2(%arg0: i32) -> (i32, i32) {
    %c0_i32 = arith.constant 0 : i32
    %c0_i32_0 = arith.constant 0 : i32
    return %arg0, %c0_i32 : i32, i32
  }
  func.func @transform_3(%arg0: i32) -> (i32, i32) {
    %c0_i32 = arith.constant 0 : i32
    %c0_i32_0 = arith.constant 0 : i32
    return %arg0, %c0_i32 : i32, i32
  }
}

</mosaic_0001>

<llo_original>
// kernel: tpu_custom_call.1
$region0: #{tpu_custom_call.1}
  #allocation0 [shape = 'u32[]', space=smem, size = 0x4, offset = 0x4, fixed_abs, tag = 'smem constant byte address 0x4 - core index']
  #allocation1 [shape = 'u32[144,128]{1,0:T(1,128)}', space=vmem, size = 0x12000, scoped, tag = 'internal scratch']
  %s0 = inlined_call_operand.vmem [shape: f32[8,32], index: 0, kind: input, shape index: {}]
  %s1 = inlined_call_operand.vmem [shape: s32[8,1], index: 1, kind: input, shape index: {}]
  %s2 = inlined_call_operand.vmem [shape: f32[8,1], index: 2, kind: input, shape index: {}]
  %s3 = inlined_call_operand.vmem [shape: f32[8,1], index: 3, kind: output, shape index: {}]
  %s4 = sld [smem:[#allocation0]]
  $region22: #{tpu_custom_call.1} parent=0
    _
  %s6 = ssub.s32 1, %s4
  %s7 = scalar_select 0, %s6, %s4
  // Predicated region
  $region2: #{tpu_custom_call.1} parent=0 // pred_check
    _
  $region3: #{tpu_custom_call.1} parent=0 // pred_check_branch
    %9 = sbr.rel (0) target = $region5
  $region4: #{tpu_custom_call.1} parent=0 // pred_region
    _
  $region5: #{tpu_custom_call.1} parent=0 // pred_fallthru
    _
  // Predicated region
  $region6: #{tpu_custom_call.1} parent=0 // pred_check
    _
  $region7: #{tpu_custom_call.1} parent=0 // pred_check_branch
    %11 = sbr.rel (0) target = $region9
  $region8: #{tpu_custom_call.1} parent=0 // pred_region
    _
  $region9: #{tpu_custom_call.1} parent=0 // pred_fallthru
    _
  // Predicated region
  $region10: #{tpu_custom_call.1} parent=0 // pred_check
    _
  $region11: #{tpu_custom_call.1} parent=0 // pred_check_branch
    %13 = sbr.rel (0) target = $region13
  $region12: #{tpu_custom_call.1} parent=0 // pred_region
    _
  $region13: #{tpu_custom_call.1} parent=0 // pred_fallthru
    _
  %v14 = vld [vmem:[%s0] sm:$0xff]
  %v15 = vld [vmem:[%s1] sm:$0xff]
  %v16 = vld [vmem:[%s2] sm:$0xff]
  %v17 = vlaneseq
  %v18 = vand.u32 %v17, 127
  %19 = vset.pattern.permute.xlu0 0
  %20 = vperm.xlu0 %19, %v15
  %v21 = vpop.permute.xlu0 %20
  %vm22 = vcmp.eq.s32.totalorder %v18, %v21
  %v23 = vsel %vm22, %v14, 0.0
  %vm24 = vcmask 261120
  %v25 = vsel %vm24, %v23, 0.0
  %26 = vadd.xlane.f32.xlu0 %v25
  %v27 = vpop.xlane.xlu0 %26
  %v28 = vsel %vm24, %v14, -inf
  %29 = vmax.xlane.f32.xlu0 %v28
  %v30 = vpop.xlane.xlu0 %29
  %v31 = vsub.f32 %v14, %v30
  %v32 = vmul.f32 %v31, 1.442695
  %v33 = vpow.pop %v32
  %v34 = vsel %vm24, %v33, 0.0
  %35 = vadd.xlane.f32.xlu0 %v34
  %v36 = vpop.xlane.xlu0 %35
  %v37 = vlog2.pop %v36
  %v38 = vmul.f32 %v37, 0.6931472
  %v39 = vadd.f32 %v30, %v38
  %v40 = vsub.f32 %v39, %v27
  %v41 = vsub.f32 0.0, %v40
  %v42 = vmul.f32 %v41, 1.442695
  %v43 = vpow.pop %v42
  %v44 = vsub.f32 1.0, %v43
  %v45 = vmax.f32 %v44, 0.0
  %v46 = vmul.f32 %v45, %v45
  %v47 = vmul.f32 %v16, %v46
  %v48 = vmul.f32 %v47, %v40
  %vm49 = vcmask 7168
  %50 = vst.msk [vmem:[%s3] sm:$0xff] %vm49, %v48
  // Predicated region
  $region14: #{tpu_custom_call.1} parent=0 // pred_check
    _
  $region15: #{tpu_custom_call.1} parent=0 // pred_check_branch
    %52 = sbr.rel (0) target = $region17
  $region16: #{tpu_custom_call.1} parent=0 // pred_region
    _
  $region17: #{tpu_custom_call.1} parent=0 // pred_fallthru
    _
  // Predicated region
  $region18: #{tpu_custom_call.1} parent=0 // pred_check
    _
  $region19: #{tpu_custom_call.1} parent=0 // pred_check_branch
    %54 = sbr.rel (0) target = $region21
  $region20: #{tpu_custom_call.1} parent=0 // pred_region
    _
  $region21: #{tpu_custom_call.1} parent=0 // pred_fallthru
    _

</llo_original>
